<compile_context>
chip_gen: v5e
topology: v5e:2x2
jax: 0.10.0
libtpu: 0.0.40
codegen_flags: <defaults>
</compile_context>

<pallas_src>
import functools
from collections import OrderedDict

import jax
import jax.numpy as jnp
from jax import lax
from jax.experimental import pallas as pl
from jax.experimental.pallas import tpu as pltpu


# ----------------------------------------------------------------------------
# pltpu.roll convention probe (one tiny kernel, cached).  pltpu.roll is
# expected to match jnp.roll (out[i] = x[i - shift]); probing once at runtime
# makes the conv taps below correct either way.
# ----------------------------------------------------------------------------
@functools.lru_cache(maxsize=None)
def _roll_shift_sign() -> int:
    def probe(x_ref, o_ref):
        o_ref[...] = pltpu.roll(x_ref[...], shift=1, axis=1)

    with jax.ensure_compile_time_eval():
        x = lax.broadcasted_iota(jnp.float32, (8, 128), 1)
        y = pl.pallas_call(
            probe, out_shape=jax.ShapeDtypeStruct((8, 128), jnp.float32))(x)
        return 1 if int(y[0, 1]) == 0 else -1


# ----------------------------------------------------------------------------
# Fully fused cycle kernel: 4 generator applications (8 conv3x3 layers) per
# batch element, everything resident in VMEM / vregs.
# ----------------------------------------------------------------------------
def cycle_kernel(x_S_ref, x_T_ref,
                 w1S_ref, b1S_ref, w2S_ref, b2S_ref,
                 w1T_ref, b1T_ref, w2T_ref, b2T_ref,
                 o_ST_ref, o_STS_ref, o_TS_ref, o_TST_ref,
                 *, H, W, Cin, Ch, roll_sign):
    HW = H * W
    pos = lax.broadcasted_iota(jnp.int32, (1, HW), 1)
    row = pos // W                       # y coordinate of each flattened pixel
    col = pos % W                        # x coordinate of each flattened pixel

    # Precompute (lane-shift, border mask) for every 3x3 tap ONCE; reused by
    # all 8 convolution layers in this grid step.
    taps = []
    for ky in range(3):
        for kx in range(3):
            dy, dx = ky - 1, kx - 1
            d = dy * W + dx              # flattened offset of this tap
            if d == 0:
                taps.append((ky, kx, 0, None))
            else:
                shift = (-roll_sign * d) % HW
                valid = ((row + dy >= 0) & (row + dy < H) &
                         (col + dx >= 0) & (col + dx < W))
                taps.append((ky, kx, shift, valid))

    def conv3x3(val, w_ref, b_ref, cout):
        # val: (cin, HW) f32;  w_ref[ky, kx]: (cout, cin);  b_ref: (cout, 1)
        acc = jnp.zeros((cout, HW), jnp.float32)
        for ky, kx, shift, valid in taps:
            if valid is None:
                shifted = val
            else:
                # shifted[p] = val[p + d]; wrapped lanes masked to the zero pad
                shifted = jnp.where(
                    valid, pltpu.roll(val, shift=shift, axis=1), 0.0)
            acc = acc + jnp.dot(w_ref[ky, kx], shifted,
                                preferred_element_type=jnp.float32)
        return acc + b_ref[...]

    def generator(x, w1_ref, b1_ref, w2_ref, b2_ref):
        h = jnp.maximum(conv3x3(x, w1_ref, b1_ref, Ch), 0.0)   # hidden in VMEM
        return jnp.tanh(conv3x3(h, w2_ref, b2_ref, Cin))

    x_T = x_T_ref[0].astype(jnp.float32)                        # (Cin, HW)
    x_TS = generator(x_T, w1S_ref, b1S_ref, w2S_ref, b2S_ref)   # G_S(x_T)
    x_TST = generator(x_TS, w1T_ref, b1T_ref, w2T_ref, b2T_ref)  # G_T(x_TS)

    x_S = x_S_ref[0].astype(jnp.float32)
    x_ST = generator(x_S, w1T_ref, b1T_ref, w2T_ref, b2T_ref)   # G_T(x_S)
    x_STS = generator(x_ST, w1S_ref, b1S_ref, w2S_ref, b2S_ref)  # G_S(x_ST)

    o_ST_ref[0] = x_ST.astype(o_ST_ref.dtype)
    o_STS_ref[0] = x_STS.astype(o_STS_ref.dtype)
    o_TS_ref[0] = x_TS.astype(o_TS_ref.dtype)
    o_TST_ref[0] = x_TST.astype(o_TST_ref.dtype)


def cycle_translate(params_S, params_T, x_S, x_T):
    """Run the full 4-generator cycle in one fused Pallas call (NCHW in/out)."""
    B, C, H, W = x_S.shape
    HW = H * W
    Ch = params_S["w1"].shape[2]          # w1: (3, 3, Ch, C) == (ky, kx, out, in)
    xs = x_S.reshape(B, C, HW)            # contiguous reshape, stays NCHW
    xt = x_T.reshape(B, C, HW)

    kernel = functools.partial(cycle_kernel, H=H, W=W, Cin=C, Ch=Ch,
                               roll_sign=_roll_shift_sign())

    img_spec = pl.BlockSpec((1, C, HW), lambda b: (b, 0, 0))

    def full_spec(shape):
        nd = len(shape)
        return pl.BlockSpec(shape, lambda b: (0,) * nd)

    outs = pl.pallas_call(
        kernel,
        out_shape=tuple(jax.ShapeDtypeStruct((B, C, HW), x_S.dtype)
                        for _ in range(4)),
        grid=(B,),
        in_specs=[
            img_spec, img_spec,
            full_spec(params_S["w1"].shape), full_spec(params_S["b1"].shape),
            full_spec(params_S["w2"].shape), full_spec(params_S["b2"].shape),
            full_spec(params_T["w1"].shape), full_spec(params_T["b1"].shape),
            full_spec(params_T["w2"].shape), full_spec(params_T["b2"].shape),
        ],
        out_specs=[img_spec, img_spec, img_spec, img_spec],
        compiler_params=pltpu.CompilerParams(
            dimension_semantics=("parallel",)),   # batch across both TCs on v7x
    )(xs, xt,
      params_S["w1"], params_S["b1"], params_S["w2"], params_S["b2"],
      params_T["w1"], params_T["b1"], params_T["w2"], params_T["b2"])

    x_ST, x_STS, x_TS, x_TST = (a.reshape(B, C, H, W) for a in outs)
    return x_ST, x_STS, x_TS, x_TST


# ----------------------------------------------------------------------------
# Parameters: weights stored as (ky, kx, out_ch, in_ch), bias as (out_ch, 1)
# ----------------------------------------------------------------------------
def init_generator_params(key, c_in, c_hidden):
    k1, k2, k3, k4 = jax.random.split(key, 4)
    s1 = 1.0 / jnp.sqrt(9.0 * c_in)
    s2 = 1.0 / jnp.sqrt(9.0 * c_hidden)
    return {
        "w1": jax.random.normal(k1, (3, 3, c_hidden, c_in), jnp.float32) * s1,
        "b1": jax.random.normal(k2, (c_hidden, 1), jnp.float32) * 0.01,
        "w2": jax.random.normal(k3, (3, 3, c_in, c_hidden), jnp.float32) * s2,
        "b2": jax.random.normal(k4, (c_in, 1), jnp.float32) * 0.01,
    }


# ----------------------------------------------------------------------------
# _forward equivalent: cyclic translation between source (S) and target (T).
# Inputs/outputs are NCHW to mirror the PyTorch module.
# TODO(synk): torch.cuda.amp autocast / GradScaler branch not modeled
#             (scaler=None path); all math is kept in f32.
# ----------------------------------------------------------------------------
@jax.jit
def _translate(params_S, params_T, x_S, x_T):
    return cycle_translate(params_S, params_T, x_S, x_T)


def forward(params_S, params_T, x_S, x_T):
    _roll_shift_sign()   # resolve roll convention eagerly (cached) before jit
    x_ST, x_STS, x_TS, x_TST = _translate(params_S, params_T, x_S, x_T)
    return OrderedDict([
        ("x_S", x_S), ("x_ST", x_ST), ("x_STS", x_STS),
        ("x_T", x_T), ("x_TS", x_TS), ("x_TST", x_TST),
    ])


# ----------------------------------------------------------------------------
# Pure-JAX reference (for the built-in correctness check)
# ----------------------------------------------------------------------------
def conv3x3_ref(x_nchw, w_hwoi, b, activation):
    w_hwio = jnp.transpose(w_hwoi, (0, 1, 3, 2))
    y = lax.conv_general_dilated(
        x_nchw, w_hwio, window_strides=(1, 1), padding="SAME",
        dimension_numbers=("NCHW", "HWIO", "NCHW"),
        precision=lax.Precision.HIGHEST)
    y = y + b.reshape(1, -1, 1, 1)
    if activation == "relu":
        return jnp.maximum(y, 0.0)
    return jnp.tanh(y)


def generator_apply_ref(params, x_nchw):
    h = conv3x3_ref(x_nchw, params["w1"], params["b1"], "relu")
    return conv3x3_ref(h, params["w2"], params["b2"], "tanh")


if __name__ == "__main__":
    B, C, H, W = 2, 4, 16, 16
    C_HIDDEN = 8

    key = jax.random.PRNGKey(0)
    k_xS, k_xT, k_gS, k_gT = jax.random.split(key, 4)

    # PyTorch-convention NCHW inputs
    x_S = jax.random.normal(k_xS, (B, C, H, W), jnp.float32)
    x_T = jax.random.normal(k_xT, (B, C, H, W), jnp.float32)

    params_S = init_generator_params(k_gS, C, C_HIDDEN)
    params_T = init_generator_params(k_gT, C, C_HIDDEN)

    visible = jax.block_until_ready(forward(params_S, params_T, x_S, x_T))

    # sanity check against the pure-JAX reference (covers both chains)
    ref_TS = generator_apply_ref(params_S, x_T)
    ref_TST = generator_apply_ref(params_T, ref_TS)
    ref_ST = generator_apply_ref(params_T, x_S)
    ref_STS = generator_apply_ref(params_S, ref_ST)
    assert jnp.allclose(ref_TS, visible["x_TS"], rtol=1e-4, atol=1e-4), "x_TS mismatch"
    assert jnp.allclose(ref_TST, visible["x_TST"], rtol=1e-4, atol=1e-4), "x_TST mismatch"
    assert jnp.allclose(ref_ST, visible["x_ST"], rtol=1e-4, atol=1e-4), "x_ST mismatch"
    assert jnp.allclose(ref_STS, visible["x_STS"], rtol=1e-4, atol=1e-4), "x_STS mismatch"
    assert list(visible.keys()) == ["x_S", "x_ST", "x_STS", "x_T", "x_TS", "x_TST"]
    for v in visible.values():
        assert v.shape == (B, C, H, W)

    print("KERNEL_OK")
</pallas_src>

<mosaic_0001>
module attributes {stable_mosaic.version = 11 : i64} {
  func.func @probe(%arg0: memref<8x128xf32, #tpu.memory_space<vmem>>, %arg1: memref<8x128xf32, #tpu.memory_space<vmem>>) attributes {dimension_semantics = [], scalar_prefetch = 0 : i64, scratch_operands = 0 : i64, tpu.core_type = #tpu.core_type<tc>} {
    %c0 = arith.constant 0 : index
    %c0_0 = arith.constant 0 : index
    %0 = vector.load %arg0[%c0, %c0_0] : memref<8x128xf32, #tpu.memory_space<vmem>>, vector<8x128xf32>
    %c1_i32 = arith.constant 1 : i32
    %1 = tpu.dynamic_rotate %0 by %c1_i32 dim 1 : vector<8x128xf32>, i32 -> vector<8x128xf32>
    %c0_1 = arith.constant 0 : index
    %c0_2 = arith.constant 0 : index
    %2 = vector.load %arg1[%c0_1, %c0_2] : memref<8x128xf32, #tpu.memory_space<vmem>>, vector<8x128xf32>
    tpu.vector_store %arg1[%c0_1, %c0_2], %1 {strides = array<i32>} : memref<8x128xf32, #tpu.memory_space<vmem>>, vector<8x128xf32>,
    return
  }
}

</mosaic_0001>

<llo_original>
// kernel: tpu_custom_call.1
$region0: #{tpu_custom_call.1}
  #allocation0 [shape = 'u32[]', space=smem, size = 0x4, offset = 0x4, fixed_abs, tag = 'smem constant byte address 0x4 - core index']
  #allocation1 [shape = 'u32[72,128]{1,0:T(1,128)}', space=vmem, size = 0x9000, scoped, tag = 'internal scratch']
  %s0 = inlined_call_operand.hbm [shape: f32[8,128], index: 0, kind: input, shape index: {}]
  %s1 = inlined_call_operand.hbm [shape: f32[8,128], index: 1, kind: output, shape index: {}]
  %s2 = sld [smem:[#allocation0]]
  $region18: #{tpu_custom_call.1} parent=0
    _
  %s4 = ssub.s32 1, %s2
  %s5 = scalar_select 0, %s4, %s2
  $region1: #{tpu_custom_call.1} parent=0
    #allocation2 [shape = 'u8[4096]{0}', space=vmem, size = 0x1000, scoped, tag = 'input window, operand 0, single buffered']
    #allocation3 [shape = 's32[1]{0}', space=sflag, size = 0x4, scoped, tag = 'scoped memory for tpu_custom_call.1']
    #allocation4 [shape = 's32[1]{0}', space=sflag, size = 0x4, scoped, tag = 'scoped memory for tpu_custom_call.1']
    #allocation5 [shape = 'u8[4096]{0}', space=vmem, size = 0x1000, scoped, tag = 'output window, operand 0, single buffered']
    %6 = vsyncpa [#allocation3], 0
    %7 = vsyncpa [#allocation4], 0
    // Predicated region
    $region2: #{tpu_custom_call.1} parent=1 // pred_check
      _
    $region3: #{tpu_custom_call.1} parent=1 // pred_check_branch
      %9 = sbr.rel (0) target = $region5
    $region4: #{tpu_custom_call.1} parent=1 // pred_region
      %11 = vsyncadd [#allocation3], 0
      %s13 = sshll.u32 %s0, 4
      %s14 = int_to_ptr.hbm [resolvable:$true] %s13
      %s15 = sshll.u32 [#allocation2], 4
      %s16 = int_to_ptr.vmem [resolvable:$true] %s15
      %18 = dma.hbm_to_vmem [thread:$0]  %s14, 128, %s16, [#allocation3]
    $region5: #{tpu_custom_call.1} parent=1 // pred_fallthru
      _
    // Predicated region
    $region6: #{tpu_custom_call.1} parent=1 // pred_check
      _
    $region7: #{tpu_custom_call.1} parent=1 // pred_check_branch
      %20 = sbr.rel (0) target = $region9
    $region8: #{tpu_custom_call.1} parent=1 // pred_region
      %22 = dma.done [#allocation3], 128
    $region9: #{tpu_custom_call.1} parent=1 // pred_fallthru
      _
    %v23 = vld [vmem:[#allocation2] sm:$0xff]
    %24 = vrot.lane.b32.xlu0 %v23, 1
    %v25 = vpop.permute.xlu0 %24
    %26 = vst [vmem:[#allocation5] sm:$0xff] %v25
    // Predicated region
    $region10: #{tpu_custom_call.1} parent=1 // pred_check
      _
    $region11: #{tpu_custom_call.1} parent=1 // pred_check_branch
      %28 = sbr.rel (0) target = $region13
    $region12: #{tpu_custom_call.1} parent=1 // pred_region
      %30 = vsyncadd [#allocation4], 0
      %s32 = sshll.u32 [#allocation5], 4
      %s33 = int_to_ptr.vmem [resolvable:$true] %s32
      %s34 = sshll.u32 %s1, 4
      %s35 = int_to_ptr.hbm [resolvable:$true] %s34
      %37 = dma.vmem_to_hbm [thread:$0]  %s33, 128, %s35, [#allocation4]
    $region13: #{tpu_custom_call.1} parent=1 // pred_fallthru
      _
    // Predicated region
    $region14: #{tpu_custom_call.1} parent=1 // pred_check
      _
    $region15: #{tpu_custom_call.1} parent=1 // pred_check_branch
      %39 = sbr.rel (0) target = $region17
    $region16: #{tpu_custom_call.1} parent=1 // pred_region
      %41 = dma.done [#allocation4], 128
    $region17: #{tpu_custom_call.1} parent=1 // pred_fallthru
      _
    %42 = vsyncpa [#allocation3], 1
    %43 = vsyncpa [#allocation4], 1

</llo_original>
